<compile_context>
chip_gen: v7x
topology: tpu7x:2x2x1
jax: 0.10.0
libtpu: 0.0.40
codegen_flags: <defaults>
</compile_context>

<pallas_src>
import functools

import jax
import jax.numpy as jnp
from jax.experimental import pallas as pl
from jax.experimental.pallas import tpu as pltpu


def _round_up(n: int, m: int) -> int:
    return (n + m - 1) // m * m


def _cdiv(a: int, b: int) -> int:
    return (a + b - 1) // b


def _vmem_ceiling_bytes() -> int:
    """Generation-aware VMEM request ceiling (leave headroom for compiler scratch)."""
    try:
        cap = int(pltpu.get_tpu_info().vmem_capacity_bytes)
        return max(32 << 20, cap - (16 << 20))     # v5e/v6e: ~112 MiB, v7x: ~48 MiB
    except Exception:
        return 48 << 20                            # safe fallback on every generation


_VMEM_CEILING = _vmem_ceiling_bytes()


def _vmem_budget_bytes(tb, f_pad, h_pad, o_pad) -> int:
    """Actual kernel footprint + headroom, clamped to the generation ceiling."""
    bf16, f32 = 2, 4
    weights = (f_pad * h_pad + h_pad * h_pad + h_pad * o_pad) * bf16   # single-buffered
    biases = 8 * (2 * h_pad + o_pad) * f32                             # sublane-padded rows
    x_io = 2 * tb * f_pad * f32                                        # double-buffered input
    out_io = 2 * tb * o_pad * f32                                      # double-buffered output
    interm = tb * h_pad * (2 * f32 + 2 * bf16)                         # h1/h2 f32 + bf16 casts
    need = weights + biases + x_io + out_io + interm
    return int(min(max(4 << 20, int(need * 1.5) + (4 << 20)), _VMEM_CEILING))


def _pick_batch_tile(B: int, max_tile: int):
    """16-aligned batch tile; >=2 tiles whenever B permits; minimal batch padding."""
    max_tile = max(16, _round_up(max_tile, 16))
    if B <= 16:
        return 16, 16
    n_tiles = max(2, _cdiv(B, max_tile))           # >=2 so v7x's 2nd TC isn't idle
    tb = min(max_tile, _round_up(_cdiv(B, n_tiles), 16))
    b_pad = n_tiles * tb
    while b_pad < B:                               # safety guard (shouldn't trigger)
        n_tiles += 1
        b_pad = n_tiles * tb
    return tb, b_pad


def mlp_kernel(x_ref, w1_ref, b1_ref, w2_ref, b2_ref, w3_ref, b3_ref, o_ref):
    # x arrives f32; cast to bf16 in-vreg (VPU work hidden under the MXU).
    x_bf = x_ref[...].astype(jnp.bfloat16)
    # Layer 1: bf16 MXU matmul with f32 accumulate; bias/ReLU in f32.
    h1 = jnp.dot(x_bf, w1_ref[...], preferred_element_type=jnp.float32)
    h1 = jnp.maximum(h1 + b1_ref[...], 0.0)
    # Layer 2.
    h2 = jnp.dot(h1.astype(jnp.bfloat16), w2_ref[...],
                 preferred_element_type=jnp.float32)
    h2 = jnp.maximum(h2 + b2_ref[...], 0.0)
    # Layer 3 (no activation); lane-dense (128-padded) unmasked f32 store.
    out = jnp.dot(h2.astype(jnp.bfloat16), w3_ref[...],
                  preferred_element_type=jnp.float32)
    o_ref[...] = (out + b3_ref[...]).astype(o_ref.dtype)


def _pad2d(a, rows, cols):
    if a.shape == (rows, cols):       # skip the pad pass entirely when aligned
        return a
    return jnp.pad(a, ((0, rows - a.shape[0]), (0, cols - a.shape[1])))


@functools.partial(jax.jit, static_argnames=("max_batch_tile",))
def text_only_regressor(x, params, *, max_batch_tile=512):
    """x: [B, text_dim] float32; params: dict of [in,out] weights / [1,out] biases."""
    w1, b1 = params["w1"], params["b1"]
    w2, b2 = params["w2"], params["b2"]
    w3, b3 = params["w3"], params["b3"]

    B, text_dim = x.shape
    hidden_dim = w1.shape[1]
    out_dim = w3.shape[1]

    # Lane-dense padded feature sizes (multiples of 128). No point padding
    # beyond 128 on v6e/v7x: zero-FLOP work; recover throughput via tb instead.
    f_pad = _round_up(text_dim, 128)
    h_pad = _round_up(hidden_dim, 128)
    o_pad = _round_up(out_dim, 128)

    tb, b_pad = _pick_batch_tile(B, max_batch_tile)

    # x stays f32 (cast happens in-kernel); weights cast to bf16 once (tiny).
    x_p = _pad2d(x, b_pad, f_pad)
    w1_p = _pad2d(w1, f_pad, h_pad).astype(jnp.bfloat16)
    w2_p = _pad2d(w2, h_pad, h_pad).astype(jnp.bfloat16)
    w3_p = _pad2d(w3, h_pad, o_pad).astype(jnp.bfloat16)
    b1_p = _pad2d(b1, 1, h_pad).astype(jnp.float32)
    b2_p = _pad2d(b2, 1, h_pad).astype(jnp.float32)
    b3_p = _pad2d(b3, 1, o_pad).astype(jnp.float32)

    grid = (b_pad // tb,)
    const = lambda i: (0, 0)

    # Constant-index weights/biases: VMEM-resident, single-buffered.
    def resident(shape):
        return pl.BlockSpec(shape, const, pipeline_mode=pl.Buffered(1))

    out_padded = pl.pallas_call(
        mlp_kernel,
        out_shape=jax.ShapeDtypeStruct((b_pad, o_pad), jnp.float32),
        grid_spec=pltpu.PrefetchScalarGridSpec(
            num_scalar_prefetch=0,
            grid=grid,
            in_specs=[
                # x: one batch tile per grid step (double-buffered by default).
                pl.BlockSpec((tb, f_pad), lambda i: (i, 0)),
                resident((f_pad, h_pad)),
                resident((1, h_pad)),
                resident((h_pad, h_pad)),
                resident((1, h_pad)),
                resident((h_pad, o_pad)),
                resident((1, o_pad)),
            ],
            out_specs=pl.BlockSpec((tb, o_pad), lambda i: (i, 0)),
        ),
        compiler_params=pltpu.CompilerParams(
            dimension_semantics=("parallel",),   # shard batch tiles across TCs (v7x)
            vmem_limit_bytes=_vmem_budget_bytes(tb, f_pad, h_pad, o_pad),
        ),
    )(x_p, w1_p, b1_p, w2_p, b2_p, w3_p, b3_p)

    # Strip batch / lane padding. (If the consumer can read the padded
    # (b_pad, 128) buffer directly, this slice pass can be skipped.)
    return out_padded[:B, :out_dim]


def init_params(key, text_dim, hidden_dim, output_dim):
    """nn.Linear-style init (W: [out,in], b: [out]), transposed to [in,out];
    biases kept 2D [1,out] for clean broadcasting in VMEM."""
    ks = jax.random.split(key, 6)

    def linear(kw, kb, fan_in, fan_out):
        bound = 1.0 / jnp.sqrt(fan_in)
        w = jax.random.uniform(kw, (fan_out, fan_in), jnp.float32, -bound, bound)
        b = jax.random.uniform(kb, (fan_out,), jnp.float32, -bound, bound)
        return w.T, b.reshape(1, fan_out)

    w1, b1 = linear(ks[0], ks[1], text_dim, hidden_dim)
    w2, b2 = linear(ks[2], ks[3], hidden_dim, hidden_dim)
    w3, b3 = linear(ks[4], ks[5], hidden_dim, output_dim)
    return {"w1": w1, "b1": b1, "w2": w2, "b2": b2, "w3": w3, "b3": b3}


def _ref_forward(x, params, cast_bf16):
    """Pure-JAX reference. cast_bf16=True mirrors the kernel's bf16 MXU inputs."""
    maybe = (lambda a: a.astype(jnp.bfloat16)) if cast_bf16 else (lambda a: a)
    h = jnp.dot(maybe(x), maybe(params["w1"]),
                preferred_element_type=jnp.float32) + params["b1"]
    h = jnp.maximum(h, 0.0)
    h = jnp.dot(maybe(h), maybe(params["w2"]),
                preferred_element_type=jnp.float32) + params["b2"]
    h = jnp.maximum(h, 0.0)
    return jnp.dot(maybe(h), maybe(params["w3"]),
                   preferred_element_type=jnp.float32) + params["b3"]


if __name__ == "__main__":
    B, TEXT_DIM, HIDDEN_DIM, OUTPUT_DIM = 8, 32, 64, 4

    key = jax.random.PRNGKey(0)
    kx, kp = jax.random.split(key)
    x = jax.random.normal(kx, (B, TEXT_DIM), jnp.float32)
    params = init_params(kp, TEXT_DIM, HIDDEN_DIM, OUTPUT_DIM)

    out = text_only_regressor(x, params)
    jax.block_until_ready(out)
    assert out.shape == (B, OUTPUT_DIM)

    # Tight check vs. bf16-input reference (same precision regime as kernel).
    ref_bf16 = _ref_forward(x, params, cast_bf16=True)
    assert jnp.allclose(out, ref_bf16, atol=2e-3, rtol=2e-3), (
        jnp.max(jnp.abs(out - ref_bf16)))

    # Looser semantic check vs. full-f32 PyTorch-equivalent forward.
    ref_f32 = _ref_forward(x, params, cast_bf16=False)
    assert jnp.allclose(out, ref_f32, atol=5e-2, rtol=5e-2), (
        jnp.max(jnp.abs(out - ref_f32)))

    print("KERNEL_OK")
</pallas_src>

<mosaic_0001>
module attributes {stable_mosaic.version = 11 : i64} {
  func.func @mlp_kernel(%arg0: i32, %arg1: memref<16x128xf32, #tpu.memory_space<vmem>>, %arg2: memref<128x128xbf16, #tpu.memory_space<vmem>>, %arg3: memref<1x128xf32, #tpu.memory_space<vmem>>, %arg4: memref<128x128xbf16, #tpu.memory_space<vmem>>, %arg5: memref<1x128xf32, #tpu.memory_space<vmem>>, %arg6: memref<128x128xbf16, #tpu.memory_space<vmem>>, %arg7: memref<1x128xf32, #tpu.memory_space<vmem>>, %arg8: memref<16x128xf32, #tpu.memory_space<vmem>>) attributes {dimension_semantics = [#tpu.dimension_semantics<parallel>], iteration_bounds = array<i64: 1>, scalar_prefetch = 0 : i64, scratch_operands = 0 : i64, tpu.core_type = #tpu.core_type<tc>, window_params = [{transform_indices = @transform_0, window_bounds = array<i64: 16, 128>}, {pipeline_mode = #tpu.pipeline_mode<synchronous>, transform_indices = @transform_1, window_bounds = array<i64: 128, 128>}, {pipeline_mode = #tpu.pipeline_mode<synchronous>, transform_indices = @transform_2, window_bounds = array<i64: 1, 128>}, {pipeline_mode = #tpu.pipeline_mode<synchronous>, transform_indices = @transform_3, window_bounds = array<i64: 128, 128>}, {pipeline_mode = #tpu.pipeline_mode<synchronous>, transform_indices = @transform_4, window_bounds = array<i64: 1, 128>}, {pipeline_mode = #tpu.pipeline_mode<synchronous>, transform_indices = @transform_5, window_bounds = array<i64: 128, 128>}, {pipeline_mode = #tpu.pipeline_mode<synchronous>, transform_indices = @transform_6, window_bounds = array<i64: 1, 128>}, {transform_indices = @transform_7, window_bounds = array<i64: 16, 128>}]} {
    %c0 = arith.constant 0 : index
    %c0_0 = arith.constant 0 : index
    %0 = vector.load %arg1[%c0, %c0_0] : memref<16x128xf32, #tpu.memory_space<vmem>>, vector<16x128xf32>
    %1 = arith.truncf %0 : vector<16x128xf32> to vector<16x128xbf16>
    %c0_1 = arith.constant 0 : index
    %c0_2 = arith.constant 0 : index
    %2 = vector.load %arg2[%c0_1, %c0_2] : memref<128x128xbf16, #tpu.memory_space<vmem>>, vector<128x128xbf16>
    %cst = arith.constant dense<0.000000e+00> : vector<16x128xf32>
    %3 = tpu.matmul %1, %2, %cst {dimension_numbers = #tpu.dot_dimension_numbers<[1], [0], [0], [1], [0, 0, 1, 1], [], []>} : vector<16x128xbf16>, vector<128x128xbf16>, vector<16x128xf32> -> vector<16x128xf32>
    %c0_3 = arith.constant 0 : index
    %c0_4 = arith.constant 0 : index
    %4 = vector.load %arg3[%c0_3, %c0_4] : memref<1x128xf32, #tpu.memory_space<vmem>>, vector<1x128xf32>
    %5 = vector.broadcast %4 : vector<1x128xf32> to vector<16x128xf32>
    %6 = arith.addf %3, %5 : vector<16x128xf32>
    %cst_5 = arith.constant 0.000000e+00 : f32
    %7 = vector.broadcast %cst_5 : f32 to vector<16x128xf32>
    %8 = arith.maximumf %6, %7 : vector<16x128xf32>
    %9 = arith.truncf %8 : vector<16x128xf32> to vector<16x128xbf16>
    %c0_6 = arith.constant 0 : index
    %c0_7 = arith.constant 0 : index
    %10 = vector.load %arg4[%c0_6, %c0_7] : memref<128x128xbf16, #tpu.memory_space<vmem>>, vector<128x128xbf16>
    %cst_8 = arith.constant dense<0.000000e+00> : vector<16x128xf32>
    %11 = tpu.matmul %9, %10, %cst_8 {dimension_numbers = #tpu.dot_dimension_numbers<[1], [0], [0], [1], [0, 0, 1, 1], [], []>} : vector<16x128xbf16>, vector<128x128xbf16>, vector<16x128xf32> -> vector<16x128xf32>
    %c0_9 = arith.constant 0 : index
    %c0_10 = arith.constant 0 : index
    %12 = vector.load %arg5[%c0_9, %c0_10] : memref<1x128xf32, #tpu.memory_space<vmem>>, vector<1x128xf32>
    %13 = vector.broadcast %12 : vector<1x128xf32> to vector<16x128xf32>
    %14 = arith.addf %11, %13 : vector<16x128xf32>
    %cst_11 = arith.constant 0.000000e+00 : f32
    %15 = vector.broadcast %cst_11 : f32 to vector<16x128xf32>
    %16 = arith.maximumf %14, %15 : vector<16x128xf32>
    %17 = arith.truncf %16 : vector<16x128xf32> to vector<16x128xbf16>
    %c0_12 = arith.constant 0 : index
    %c0_13 = arith.constant 0 : index
    %18 = vector.load %arg6[%c0_12, %c0_13] : memref<128x128xbf16, #tpu.memory_space<vmem>>, vector<128x128xbf16>
    %cst_14 = arith.constant dense<0.000000e+00> : vector<16x128xf32>
    %19 = tpu.matmul %17, %18, %cst_14 {dimension_numbers = #tpu.dot_dimension_numbers<[1], [0], [0], [1], [0, 0, 1, 1], [], []>} : vector<16x128xbf16>, vector<128x128xbf16>, vector<16x128xf32> -> vector<16x128xf32>
    %c0_15 = arith.constant 0 : index
    %c0_16 = arith.constant 0 : index
    %20 = vector.load %arg7[%c0_15, %c0_16] : memref<1x128xf32, #tpu.memory_space<vmem>>, vector<1x128xf32>
    %21 = vector.broadcast %20 : vector<1x128xf32> to vector<16x128xf32>
    %22 = arith.addf %19, %21 : vector<16x128xf32>
    %c0_17 = arith.constant 0 : index
    %c0_18 = arith.constant 0 : index
    %23 = vector.load %arg8[%c0_17, %c0_18] : memref<16x128xf32, #tpu.memory_space<vmem>>, vector<16x128xf32>
    tpu.vector_store %arg8[%c0_17, %c0_18], %22 {strides = array<i32>} : memref<16x128xf32, #tpu.memory_space<vmem>>, vector<16x128xf32>,
    return
  }
  func.func @transform_0(%arg0: i32) -> (i32, i32) {
    %c0_i32 = arith.constant 0 : i32
    %c0_i32_0 = arith.constant 0 : i32
    return %arg0, %c0_i32 : i32, i32
  }
  func.func @transform_1(%arg0: i32) -> (i32, i32) {
    %c0_i32 = arith.constant 0 : i32
    %c0_i32_0 = arith.constant 0 : i32
    %c0_i32_1 = arith.constant 0 : i32
    return %c0_i32, %c0_i32_0 : i32, i32
  }
  func.func @transform_2(%arg0: i32) -> (i32, i32) {
    %c0_i32 = arith.constant 0 : i32
    %c0_i32_0 = arith.constant 0 : i32
    %c0_i32_1 = arith.constant 0 : i32
    return %c0_i32, %c0_i32_0 : i32, i32
  }
  func.func @transform_3(%arg0: i32) -> (i32, i32) {
    %c0_i32 = arith.constant 0 : i32
    %c0_i32_0 = arith.constant 0 : i32
    %c0_i32_1 = arith.constant 0 : i32
    return %c0_i32, %c0_i32_0 : i32, i32
  }
  func.func @transform_4(%arg0: i32) -> (i32, i32) {
    %c0_i32 = arith.constant 0 : i32
    %c0_i32_0 = arith.constant 0 : i32
    %c0_i32_1 = arith.constant 0 : i32
    return %c0_i32, %c0_i32_0 : i32, i32
  }
  func.func @transform_5(%arg0: i32) -> (i32, i32) {
    %c0_i32 = arith.constant 0 : i32
    %c0_i32_0 = arith.constant 0 : i32
    %c0_i32_1 = arith.constant 0 : i32
    return %c0_i32, %c0_i32_0 : i32, i32
  }
  func.func @transform_6(%arg0: i32) -> (i32, i32) {
    %c0_i32 = arith.constant 0 : i32
    %c0_i32_0 = arith.constant 0 : i32
    %c0_i32_1 = arith.constant 0 : i32
    return %c0_i32, %c0_i32_0 : i32, i32
  }
  func.func @transform_7(%arg0: i32) -> (i32, i32) {
    %c0_i32 = arith.constant 0 : i32
    %c0_i32_0 = arith.constant 0 : i32
    return %arg0, %c0_i32 : i32, i32
  }
}

</mosaic_0001>

<llo_original>
// kernel: text_only_regressor.1
$region0: #{text_only_regressor.1}
  #allocation0 [shape = 'u32[]', space=smem, size = 0x4, offset = 0x4, fixed_abs, tag = 'smem constant byte address 0x4 - core index']
  #allocation1 [shape = 'u32[144,128]{1,0:T(1,128)}', space=vmem, size = 0x12000, scoped, tag = 'internal scratch']
  %s0 = inlined_call_operand.vmem [shape: f32[16,128], index: 0, kind: input, shape index: {}]
  %s1 = inlined_call_operand.vmem [shape: bf16[128,128], index: 1, kind: input, shape index: {}]
  %s2 = inlined_call_operand.vmem [shape: f32[1,128], index: 2, kind: input, shape index: {}]
  %s3 = inlined_call_operand.vmem [shape: bf16[128,128], index: 3, kind: input, shape index: {}]
  %s4 = inlined_call_operand.vmem [shape: f32[1,128], index: 4, kind: input, shape index: {}]
  %s5 = inlined_call_operand.vmem [shape: bf16[128,128], index: 5, kind: input, shape index: {}]
  %s6 = inlined_call_operand.vmem [shape: f32[1,128], index: 6, kind: input, shape index: {}]
  %s7 = inlined_call_operand.vmem [shape: f32[16,128], index: 7, kind: output, shape index: {}]
  %s8 = sld [smem:[#allocation0]]
  $region38: #{text_only_regressor.1} parent=0
    _
  %s10 = ssub.s32 1, %s8
  %s11 = scalar_select 0, %s10, %s8
  // Predicated region
  $region2: #{text_only_regressor.1} parent=0 // pred_check
    _
  $region3: #{text_only_regressor.1} parent=0 // pred_check_branch
    %13 = sbr.rel (0) target = $region5
  $region4: #{text_only_regressor.1} parent=0 // pred_region
    _
  $region5: #{text_only_regressor.1} parent=0 // pred_fallthru
    _
  // Predicated region
  $region6: #{text_only_regressor.1} parent=0 // pred_check
    _
  $region7: #{text_only_regressor.1} parent=0 // pred_check_branch
    %15 = sbr.rel (0) target = $region9
  $region8: #{text_only_regressor.1} parent=0 // pred_region
    _
  $region9: #{text_only_regressor.1} parent=0 // pred_fallthru
    _
  // Predicated region
  $region10: #{text_only_regressor.1} parent=0 // pred_check
    _
  $region11: #{text_only_regressor.1} parent=0 // pred_check_branch
    %17 = sbr.rel (0) target = $region13
  $region12: #{text_only_regressor.1} parent=0 // pred_region
    _
  $region13: #{text_only_regressor.1} parent=0 // pred_fallthru
    _
  // Predicated region
  $region14: #{text_only_regressor.1} parent=0 // pred_check
    _
  $region15: #{text_only_regressor.1} parent=0 // pred_check_branch
    %19 = sbr.rel (0) target = $region17
  $region16: #{text_only_regressor.1} parent=0 // pred_region
    _
  $region17: #{text_only_regressor.1} parent=0 // pred_fallthru
    _
  // Predicated region
  $region18: #{text_only_regressor.1} parent=0 // pred_check
    _
  $region19: #{text_only_regressor.1} parent=0 // pred_check_branch
    %21 = sbr.rel (0) target = $region21
  $region20: #{text_only_regressor.1} parent=0 // pred_region
    _
  $region21: #{text_only_regressor.1} parent=0 // pred_fallthru
    _
  // Predicated region
  $region22: #{text_only_regressor.1} parent=0 // pred_check
    _
  $region23: #{text_only_regressor.1} parent=0 // pred_check_branch
    %23 = sbr.rel (0) target = $region25
  $region24: #{text_only_regressor.1} parent=0 // pred_region
    _
  $region25: #{text_only_regressor.1} parent=0 // pred_fallthru
    _
  // Predicated region
  $region26: #{text_only_regressor.1} parent=0 // pred_check
    _
  $region27: #{text_only_regressor.1} parent=0 // pred_check_branch
    %25 = sbr.rel (0) target = $region29
  $region28: #{text_only_regressor.1} parent=0 // pred_region
    _
  $region29: #{text_only_regressor.1} parent=0 // pred_fallthru
    _
  %v27 = vld [vmem:[%s0] sm:$0xff]
  %v28 = vld [vmem:[%s0 + $0x8] sm:$0xff]
  %v29 = vpack.c.bf16 %v28, %v27
  %v30 = vld [vmem:[%s1] sm:$0xf]
  %v31 = vld [vmem:[%s1 + $0x4] sm:$0xf]
  %v32 = vld [vmem:[%s1 + $0x8] sm:$0xf]
  %v33 = vld [vmem:[%s1 + $0xc] sm:$0xf]
  %v34 = vld [vmem:[%s1 + $0x10] sm:$0xf]
  %v35 = vld [vmem:[%s1 + $0x14] sm:$0xf]
  %v36 = vld [vmem:[%s1 + $0x18] sm:$0xf]
  %v37 = vld [vmem:[%s1 + $0x1c] sm:$0xf]
  %v38 = vld [vmem:[%s1 + $0x20] sm:$0xf]
  %v39 = vld [vmem:[%s1 + $0x24] sm:$0xf]
  %v40 = vld [vmem:[%s1 + $0x28] sm:$0xf]
  %v41 = vld [vmem:[%s1 + $0x2c] sm:$0xf]
  %v42 = vld [vmem:[%s1 + $0x30] sm:$0xf]
  %v43 = vld [vmem:[%s1 + $0x34] sm:$0xf]
  %v44 = vld [vmem:[%s1 + $0x38] sm:$0xf]
  %v45 = vld [vmem:[%s1 + $0x3c] sm:$0xf]
  %v46 = vld [vmem:[%s2] sm:$0x1]
  %v48 = vlaneseq
  %v49 = vshrl.u32 %v48, 7
  %v50 = vsub.s32 0, %v49
  %v51 = vrot.slane %v46, %v50
  %v69 = vunpack.c.l.b16 %v30
  %v70 = vunpack.c.l.b16 %v31
  %v71 = vunpack.c.l.b16 %v32
  %v72 = vunpack.c.l.b16 %v33
  %v73 = vunpack.c.l.b16 %v34
  %v74 = vunpack.c.l.b16 %v35
  %v75 = vunpack.c.l.b16 %v36
  %v76 = vunpack.c.l.b16 %v37
  %v77 = vunpack.c.l.b16 %v38
  %v78 = vunpack.c.l.b16 %v39
  %v79 = vunpack.c.l.b16 %v40
  %v80 = vunpack.c.l.b16 %v41
  %v81 = vunpack.c.l.b16 %v42
  %v82 = vunpack.c.l.b16 %v43
  %v83 = vunpack.c.l.b16 %v44
  %v84 = vunpack.c.l.b16 %v45
  %v85 = vpack.c.b16 %v70, %v69
  %v86 = vpack.c.b16 %v72, %v71
  %v87 = vpack.c.b16 %v74, %v73
  %v88 = vpack.c.b16 %v76, %v75
  %v89 = vpack.c.b16 %v78, %v77
  %v90 = vpack.c.b16 %v80, %v79
  %v91 = vpack.c.b16 %v82, %v81
  %v92 = vpack.c.b16 %v84, %v83
  %101 = vmatprep.subr.bf16.mxu0 0
  %102 = vmatpush1.bf16.msra.mxu0 %v85
  %103 = vmatprep.subr.bf16.mxu0 0
  %104 = vmatpush1.bf16.msra.mxu0 %v86
  %105 = vmatprep.subr.bf16.mxu0 0
  %106 = vmatpush1.bf16.msra.mxu0 %v87
  %107 = vmatprep.subr.bf16.mxu0 0
  %108 = vmatpush1.bf16.msra.mxu0 %v88
  %109 = vmatprep.subr.bf16.mxu0 0
  %110 = vmatpush1.bf16.msra.mxu0 %v89
  %111 = vmatprep.subr.bf16.mxu0 0
  %112 = vmatpush1.bf16.msra.mxu0 %v90
  %113 = vmatprep.subr.bf16.mxu0 0
  %114 = vmatpush1.bf16.msra.mxu0 %v91
  %115 = vmatprep.subr.bf16.mxu0 0
  %116 = vmatpush1.bf16.msra.mxu0 %v92
  %117 = vmatprep.subr.bf16.mxu0 0
  %118 = vmatpush1.bf16.msra.mxu0 0
  %119 = vmatprep.subr.bf16.mxu0 0
  %120 = vmatpush1.bf16.msra.mxu0 0
  %121 = vmatprep.subr.bf16.mxu0 0
  %122 = vmatpush1.bf16.msra.mxu0 0
  %123 = vmatprep.subr.bf16.mxu0 0
  %124 = vmatpush1.bf16.msra.mxu0 0
  %125 = vmatprep.subr.bf16.mxu0 0
  %126 = vmatpush1.bf16.msra.mxu0 0
  %127 = vmatprep.subr.bf16.mxu0 0
  %128 = vmatpush1.bf16.msra.mxu0 0
  %129 = vmatprep.subr.bf16.mxu0 0
  %130 = vmatpush1.bf16.msra.mxu0 0
  %131 = vmatprep.subr.bf16.mxu0 0
  %132 = vmatpush1.bf16.msra.mxu0 0
  %133 = vmatprep.mubr.bf16.mxu0 0
  %134 = vmatmul.mubr.bf16.gmra.mrb[0].mxu0 %v29
  %v135 = vpop.f32.mrb[0].mxu0
  %v136 = vadd.f32 %v51, %v135
  %v137 = vpop.f32.mrb[0].mxu0
  %v138 = vpop.f32.mrb[0].mxu0
  %v139 = vadd.f32 %v51, %v138
  %v140 = vpop.f32.mrb[0].mxu0
  %141 = vdwg.mxu0
  %v142 = vmax.f32 %v136, 0.0
  %v143 = vmax.f32 %v139, 0.0
  %v144 = vpack.c.bf16 %v143, %v142
  %v145 = vld [vmem:[%s3] sm:$0xf]
  %v146 = vld [vmem:[%s3 + $0x4] sm:$0xf]
  %v147 = vld [vmem:[%s3 + $0x8] sm:$0xf]
  %v148 = vld [vmem:[%s3 + $0xc] sm:$0xf]
  %v149 = vld [vmem:[%s3 + $0x10] sm:$0xf]
  %v150 = vld [vmem:[%s3 + $0x14] sm:$0xf]
  %v151 = vld [vmem:[%s3 + $0x18] sm:$0xf]
  %v152 = vld [vmem:[%s3 + $0x1c] sm:$0xf]
  %v153 = vld [vmem:[%s3 + $0x20] sm:$0xf]
  %v154 = vld [vmem:[%s3 + $0x24] sm:$0xf]
  %v155 = vld [vmem:[%s3 + $0x28] sm:$0xf]
  %v156 = vld [vmem:[%s3 + $0x2c] sm:$0xf]
  %v157 = vld [vmem:[%s3 + $0x30] sm:$0xf]
  %v158 = vld [vmem:[%s3 + $0x34] sm:$0xf]
  %v159 = vld [vmem:[%s3 + $0x38] sm:$0xf]
  %v160 = vld [vmem:[%s3 + $0x3c] sm:$0xf]
  %v161 = vld [vmem:[%s4] sm:$0x1]
  %v163 = vlaneseq
  %v164 = vshrl.u32 %v163, 7
  %v165 = vsub.s32 0, %v164
  %v166 = vrot.slane %v161, %v165
  %v184 = vunpack.c.l.b16 %v145
  %v185 = vunpack.c.l.b16 %v146
  %v186 = vunpack.c.l.b16 %v147
  %v187 = vunpack.c.l.b16 %v148
  %v188 = vunpack.c.l.b16 %v149
  %v189 = vunpack.c.l.b16 %v150
  %v190 = vunpack.c.l.b16 %v151
  %v191 = vunpack.c.l.b16 %v152
  %v192 = vunpack.c.l.b16 %v153
  %v193 = vunpack.c.l.b16 %v154
  %v194 = vunpack.c.l.b16 %v155
  %v195 = vunpack.c.l.b16 %v156
  %v196 = vunpack.c.l.b16 %v157
  %v197 = vunpack.c.l.b16 %v158
  %v198 = vunpack.c.l.b16 %v159
  %v199 = vunpack.c.l.b16 %v160
  %v200 = vpack.c.b16 %v185, %v184
  %v201 = vpack.c.b16 %v187, %v186
  %v202 = vpack.c.b16 %v189, %v188
  %v203 = vpack.c.b16 %v191, %v190
  %v204 = vpack.c.b16 %v193, %v192
  %v205 = vpack.c.b16 %v195, %v194
  %v206 = vpack.c.b16 %v197, %v196
  %v207 = vpack.c.b16 %v199, %v198
  %216 = vmatprep.subr.bf16.mxu0 0
  %217 = vmatpush1.bf16.msra.mxu0 %v200
  %218 = vmatprep.subr.bf16.mxu0 0
  %219 = vmatpush1.bf16.msra.mxu0 %v201
  %220 = vmatprep.subr.bf16.mxu0 0
  %221 = vmatpush1.bf16.msra.mxu0 %v202
  %222 = vmatprep.subr.bf16.mxu0 0
  %223 = vmatpush1.bf16.msra.mxu0 %v203
  %224 = vmatprep.subr.bf16.mxu0 0
  %225 = vmatpush1.bf16.msra.mxu0 %v204
  %226 = vmatprep.subr.bf16.mxu0 0
  %227 = vmatpush1.bf16.msra.mxu0 %v205
  %228 = vmatprep.subr.bf16.mxu0 0
  %229 = vmatpush1.bf16.msra.mxu0 %v206
  %230 = vmatprep.subr.bf16.mxu0 0
  %231 = vmatpush1.bf16.msra.mxu0 %v207
  %232 = vmatprep.subr.bf16.mxu0 0
  %233 = vmatpush1.bf16.msra.mxu0 0
  %234 = vmatprep.subr.bf16.mxu0 0
  %235 = vmatpush1.bf16.msra.mxu0 0
  %236 = vmatprep.subr.bf16.mxu0 0
  %237 = vmatpush1.bf16.msra.mxu0 0
  %238 = vmatprep.subr.bf16.mxu0 0
  %239 = vmatpush1.bf16.msra.mxu0 0
  %240 = vmatprep.subr.bf16.mxu0 0
  %241 = vmatpush1.bf16.msra.mxu0 0
  %242 = vmatprep.subr.bf16.mxu0 0
  %243 = vmatpush1.bf16.msra.mxu0 0
  %244 = vmatprep.subr.bf16.mxu0 0
  %245 = vmatpush1.bf16.msra.mxu0 0
  %246 = vmatprep.subr.bf16.mxu0 0
  %247 = vmatpush1.bf16.msra.mxu0 0
  %248 = vmatprep.mubr.bf16.mxu0 0
  %249 = vmatmul.mubr.bf16.gmra.mrb[0].mxu0 %v144
  %v250 = vpop.f32.mrb[0].mxu0
  %v251 = vadd.f32 %v166, %v250
  %v252 = vpop.f32.mrb[0].mxu0
  %v253 = vpop.f32.mrb[0].mxu0
  %v254 = vadd.f32 %v166, %v253
  %v255 = vpop.f32.mrb[0].mxu0
  %256 = vdwg.mxu0
  %v257 = vmax.f32 %v251, 0.0
  %v258 = vmax.f32 %v254, 0.0
  %v259 = vpack.c.bf16 %v258, %v257
  %v260 = vld [vmem:[%s5] sm:$0xf]
  %v261 = vld [vmem:[%s5 + $0x4] sm:$0xf]
  %v262 = vld [vmem:[%s5 + $0x8] sm:$0xf]
  %v263 = vld [vmem:[%s5 + $0xc] sm:$0xf]
  %v264 = vld [vmem:[%s5 + $0x10] sm:$0xf]
  %v265 = vld [vmem:[%s5 + $0x14] sm:$0xf]
  %v266 = vld [vmem:[%s5 + $0x18] sm:$0xf]
  %v267 = vld [vmem:[%s5 + $0x1c] sm:$0xf]
  %v268 = vld [vmem:[%s5 + $0x20] sm:$0xf]
  %v269 = vld [vmem:[%s5 + $0x24] sm:$0xf]
  %v270 = vld [vmem:[%s5 + $0x28] sm:$0xf]
  %v271 = vld [vmem:[%s5 + $0x2c] sm:$0xf]
  %v272 = vld [vmem:[%s5 + $0x30] sm:$0xf]
  %v273 = vld [vmem:[%s5 + $0x34] sm:$0xf]
  %v274 = vld [vmem:[%s5 + $0x38] sm:$0xf]
  %v275 = vld [vmem:[%s5 + $0x3c] sm:$0xf]
  %v276 = vld [vmem:[%s6] sm:$0x1]
  %v278 = vlaneseq
  %v279 = vshrl.u32 %v278, 7
  %v280 = vsub.s32 0, %v279
  %v281 = vrot.slane %v276, %v280
  %v299 = vunpack.c.l.b16 %v260
  %v300 = vunpack.c.l.b16 %v261
  %v301 = vunpack.c.l.b16 %v262
  %v302 = vunpack.c.l.b16 %v263
  %v303 = vunpack.c.l.b16 %v264
  %v304 = vunpack.c.l.b16 %v265
  %v305 = vunpack.c.l.b16 %v266
  %v306 = vunpack.c.l.b16 %v267
  %v307 = vunpack.c.l.b16 %v268
  %v308 = vunpack.c.l.b16 %v269
  %v309 = vunpack.c.l.b16 %v270
  %v310 = vunpack.c.l.b16 %v271
  %v311 = vunpack.c.l.b16 %v272
  %v312 = vunpack.c.l.b16 %v273
  %v313 = vunpack.c.l.b16 %v274
  %v314 = vunpack.c.l.b16 %v275
  %v315 = vpack.c.b16 %v300, %v299
  %v316 = vpack.c.b16 %v302, %v301
  %v317 = vpack.c.b16 %v304, %v303
  %v318 = vpack.c.b16 %v306, %v305
  %v319 = vpack.c.b16 %v308, %v307
  %v320 = vpack.c.b16 %v310, %v309
  %v321 = vpack.c.b16 %v312, %v311
  %v322 = vpack.c.b16 %v314, %v313
  %331 = vmatprep.subr.bf16.mxu0 0
  %332 = vmatpush1.bf16.msra.mxu0 %v315
  %333 = vmatprep.subr.bf16.mxu0 0
  %334 = vmatpush1.bf16.msra.mxu0 %v316
  %335 = vmatprep.subr.bf16.mxu0 0
  %336 = vmatpush1.bf16.msra.mxu0 %v317
  %337 = vmatprep.subr.bf16.mxu0 0
  %338 = vmatpush1.bf16.msra.mxu0 %v318
  %339 = vmatprep.subr.bf16.mxu0 0
  %340 = vmatpush1.bf16.msra.mxu0 %v319
  %341 = vmatprep.subr.bf16.mxu0 0
  %342 = vmatpush1.bf16.msra.mxu0 %v320
  %343 = vmatprep.subr.bf16.mxu0 0
  %344 = vmatpush1.bf16.msra.mxu0 %v321
  %345 = vmatprep.subr.bf16.mxu0 0
  %346 = vmatpush1.bf16.msra.mxu0 %v322
  %347 = vmatprep.subr.bf16.mxu0 0
  %348 = vmatpush1.bf16.msra.mxu0 0
  %349 = vmatprep.subr.bf16.mxu0 0
  %350 = vmatpush1.bf16.msra.mxu0 0
  %351 = vmatprep.subr.bf16.mxu0 0
  %352 = vmatpush1.bf16.msra.mxu0 0
  %353 = vmatprep.subr.bf16.mxu0 0
  %354 = vmatpush1.bf16.msra.mxu0 0
  %355 = vmatprep.subr.bf16.mxu0 0
  %356 = vmatpush1.bf16.msra.mxu0 0
  %357 = vmatprep.subr.bf16.mxu0 0
  %358 = vmatpush1.bf16.msra.mxu0 0
  %359 = vmatprep.subr.bf16.mxu0 0
  %360 = vmatpush1.bf16.msra.mxu0 0
  %361 = vmatprep.subr.bf16.mxu0 0
  %362 = vmatpush1.bf16.msra.mxu0 0
  %363 = vmatprep.mubr.bf16.mxu0 0
  %364 = vmatmul.mubr.bf16.gmra.mrb[0].mxu0 %v259
  %v365 = vpop.f32.mrb[0].mxu0
  %v366 = vadd.f32 %v281, %v365
  %v367 = vpop.f32.mrb[0].mxu0
  %v368 = vpop.f32.mrb[0].mxu0
  %v369 = vadd.f32 %v281, %v368
  %v370 = vpop.f32.mrb[0].mxu0
  %371 = vdwg.mxu0
  %372 = vst [vmem:[%s7] sm:$0xff] %v366
  %373 = vst [vmem:[%s7 + $0x8] sm:$0xff] %v369
  // Predicated region
  $region30: #{text_only_regressor.1} parent=0 // pred_check
    _
  $region31: #{text_only_regressor.1} parent=0 // pred_check_branch
    %375 = sbr.rel (0) target = $region33
  $region32: #{text_only_regressor.1} parent=0 // pred_region
    _
  $region33: #{text_only_regressor.1} parent=0 // pred_fallthru
    _
  // Predicated region
  $region34: #{text_only_regressor.1} parent=0 // pred_check
    _
  $region35: #{text_only_regressor.1} parent=0 // pred_check_branch
    %377 = sbr.rel (0) target = $region37
  $region36: #{text_only_regressor.1} parent=0 // pred_region
    _
  $region37: #{text_only_regressor.1} parent=0 // pred_fallthru
    _

</llo_original>
